<compile_context>
chip_gen: v5e
topology: v5e:2x2
jax: 0.10.0
libtpu: 0.0.40
codegen_flags: <defaults>
</compile_context>

<pallas_src>
import functools

import jax
import jax.numpy as jnp
from jax.experimental import pallas as pl
from jax.experimental.pallas import tpu as pltpu


# ----------------------------- Pallas kernel ------------------------------ #

def bilstm_kernel(gx_ref, len_ref, tgt_ref, whh_ref, wfc_ref, bfc_ref, out_ref,
                  *, T, B, H, O):
    R = 2 * B          # fused rows: [0, B) = forward direction, [B, 2B) = backward
    G = 4 * H          # gate width per direction

    gx = gx_ref[...]               # (T*2B, 4H) f32: precomputed x-gates (+ biases)
    lengths = len_ref[...]         # (2B, 1) int32
    tgt = tgt_ref[...]             # (2B, 1) int32
    whh = whh_ref[...]             # (H, 8H) bf16  = [w_hh_f.T | w_hh_b.T] stacked on N

    # Direction flag per fused row (staged iota -> no captured constants).
    row = jax.lax.broadcasted_iota(jnp.int32, (R, 1), 0)
    is_fwd = row < B               # (2B, 1) bool

    h = jnp.zeros((R, H), jnp.float32)
    c = jnp.zeros((R, H), jnp.float32)
    out = jnp.zeros((R, H), jnp.float32)
    h_b16 = jnp.zeros((R, H), jnp.bfloat16)   # bf16 copy of h for the MXU LHS

    # Fully unrolled time loop (T small & static): every slice is a free,
    # vreg-aligned view (R multiple of 8 sublanes, 4H/8H multiples of 128 lanes).
    for t in range(T):
        # Absolute timestep per row: forward rows see t, backward rows see T-1-t.
        t_abs = jnp.where(is_fwd, t, T - 1 - t)          # (2B, 1), scalar literals only

        gx_t = gx[t * R:(t + 1) * R, :]                  # (2B, 4H) static slice

        if t == 0:
            gates = gx_t                                 # h == 0: skip the matmul
        else:
            # One N-stacked recurrent MXU push serves both directions.
            gh_all = jnp.dot(h_b16, whh,
                             preferred_element_type=jnp.float32)      # (2B, 8H)
            gh = jnp.where(is_fwd, gh_all[:, :G], gh_all[:, G:])      # (2B, 4H)
            gates = gx_t + gh

        sig = jax.nn.sigmoid(gates)      # full-width EUP ops, then lane slices
        tnh = jnp.tanh(gates)
        i_g = sig[:, 0 * H:1 * H]
        f_g = sig[:, 1 * H:2 * H]
        g_g = tnh[:, 2 * H:3 * H]
        o_g = sig[:, 3 * H:4 * H]

        c_new = f_g * c + i_g * g_g
        h_new = o_g * jnp.tanh(c_new)

        valid = t_abs < lengths                          # pack_padded_sequence masking
        h = jnp.where(valid, h_new, h)
        c = jnp.where(valid, c_new, c)
        out = jnp.where(t_abs == tgt, h, out)            # grab h at the target timestep
        h_b16 = h.astype(jnp.bfloat16)                   # cast once, at end of step

    # Epilogue FC as a single MXU push: W = [wfc[:H] | wfc[H:]] stacked on N.
    full = jnp.dot(out, wfc_ref[...], preferred_element_type=jnp.float32)   # (2B, 2O)
    out_ref[...] = full[:B, :O] + full[B:, O:] + bfc_ref[...]


# --------------------------- One-time param prep ---------------------------- #

def prepare_params(params):
    """Per-call-invariant re-layout (cached outside the forward).

    The embedding is frozen in the PyTorch module, so emb @ w_ih.T + b_ih + b_hh
    is folded into a per-token gate lookup table: the per-call x-projection
    becomes a single row gather.
    """
    H = params["w_hh_f"].shape[1]
    O = params["w_fc"].shape[0]
    hi = jax.lax.Precision.HIGHEST
    emb = params["emb"].astype(jnp.float32)

    tbl_f = (jnp.dot(emb, params["w_ih_f"].T, precision=hi)
             + params["b_ih_f"] + params["b_hh_f"])                  # (V, 4H)
    tbl_b = (jnp.dot(emb, params["w_ih_b"].T, precision=hi)
             + params["b_ih_b"] + params["b_hh_b"])                  # (V, 4H)
    gate_table = jnp.concatenate([tbl_f, tbl_b], axis=0).astype(jnp.float32)  # (2V, 4H)

    # Recurrent weights stacked along N: one matmul per step serves both directions.
    w_hh = jnp.concatenate([params["w_hh_f"].T, params["w_hh_b"].T],
                           axis=1).astype(jnp.bfloat16)              # (H, 8H)

    # Final FC, K-split folded into an N-stack (single MXU push in the kernel).
    wfc_T = params["w_fc"].T.astype(jnp.float32)                     # (2H, O)
    w_fc2 = jnp.concatenate([wfc_T[:H, :], wfc_T[H:, :]], axis=1)    # (H, 2O)
    b_fc = params["b_fc"].reshape(1, O).astype(jnp.float32)

    return {"gate_table": gate_table, "w_hh": w_hh, "w_fc2": w_fc2, "b_fc": b_fc}


# ------------------------------- Forward ------------------------------------ #

def _forward(prepped, batch_tokens, length_list, target_index_list):
    """Equivalent of MyLSTM.forward: returns (batch_size, output_size) float32."""
    B, T = batch_tokens.shape
    V = prepped["gate_table"].shape[0] // 2
    H = prepped["w_hh"].shape[0]
    O = prepped["b_fc"].shape[1]
    R = 2 * B

    # Direction-fused, time-major gather indices into the gate table:
    #   rows [t*2B, t*2B+B)     -> forward x-gates of x_t        (table rows [0, V))
    #   rows [t*2B+B, (t+1)*2B) -> backward x-gates of x_{T-1-t} (table rows [V, 2V))
    tok_tm = batch_tokens.astype(jnp.int32).T                        # (T, B)
    idx = jnp.concatenate([tok_tm, tok_tm[::-1] + V], axis=1).reshape(-1)   # (T*2B,)
    gx = jnp.take(prepped["gate_table"], idx, axis=0)                # (T*2B, 4H) f32

    lengths = length_list.astype(jnp.int32).reshape(B, 1)
    tgt = target_index_list.astype(jnp.int32).reshape(B, 1)
    lengths2 = jnp.concatenate([lengths, lengths], axis=0)           # (2B, 1)
    tgt2 = jnp.concatenate([tgt, tgt], axis=0)                       # (2B, 1)

    kernel = functools.partial(bilstm_kernel, T=T, B=B, H=H, O=O)
    vmem = pl.BlockSpec(memory_space=pltpu.MemorySpace.VMEM)
    return pl.pallas_call(
        kernel,
        out_shape=jax.ShapeDtypeStruct((B, O), jnp.float32),
        in_specs=[vmem] * 6,
        out_specs=vmem,
    )(gx, lengths2, tgt2, prepped["w_hh"], prepped["w_fc2"], prepped["b_fc"])


my_lstm_forward = jax.jit(_forward)


# --------------------------- Pure-JAX reference ----------------------------- #

def reference_forward(params, batch_tokens, length_list, target_index_list):
    embeds = jnp.take(params["emb"], batch_tokens, axis=0)          # (B, T, E)
    B, T, _ = embeds.shape
    H = params["w_hh_f"].shape[1]

    def cell(x_t, h, c, w_ih, w_hh, b_ih, b_hh):
        gates = x_t @ w_ih.T + h @ w_hh.T + b_ih + b_hh
        i, f, g, o = jnp.split(gates, 4, axis=-1)
        c_new = jax.nn.sigmoid(f) * c + jax.nn.sigmoid(i) * jnp.tanh(g)
        h_new = jax.nn.sigmoid(o) * jnp.tanh(c_new)
        return h_new, c_new

    zeros = jnp.zeros((B, H), jnp.float32)

    h = c = zeros
    out_f = zeros
    for t in range(T):
        h_new, c_new = cell(embeds[:, t], h, c, params["w_ih_f"], params["w_hh_f"],
                            params["b_ih_f"], params["b_hh_f"])
        valid = (t < length_list)[:, None]
        h = jnp.where(valid, h_new, h)
        c = jnp.where(valid, c_new, c)
        out_f = jnp.where((t == target_index_list)[:, None], h, out_f)

    h = c = zeros
    out_b = zeros
    for t in range(T - 1, -1, -1):
        h_new, c_new = cell(embeds[:, t], h, c, params["w_ih_b"], params["w_hh_b"],
                            params["b_ih_b"], params["b_hh_b"])
        valid = (t < length_list)[:, None]
        h = jnp.where(valid, h_new, h)
        c = jnp.where(valid, c_new, c)
        out_b = jnp.where((t == target_index_list)[:, None], h, out_b)

    feat = jnp.concatenate([out_f, out_b], axis=-1)
    return feat @ params["w_fc"].T + params["b_fc"]


# ---------------------------------- Main ------------------------------------ #

if __name__ == "__main__":
    # Small, deterministic configuration consistent with the module's forward.
    V, E, H, O = 40, 32, 32, 8        # vocab, embedding_dim, hidden_dim, output_size
    B, T = 4, 8                       # batch_size, max_seq_len
    PADDING_IDX = 1

    key = jax.random.PRNGKey(0)
    ks = jax.random.split(key, 12)

    def init(k, shape, scale=0.1):
        return (scale * jax.random.normal(k, shape)).astype(jnp.float32)

    emb = init(ks[0], (V, E), 1.0)
    emb = emb.at[PADDING_IDX].set(0.0)                # padding_idx row is zero

    params = {
        "emb": emb,
        # forward-direction LSTM (PyTorch shapes: (4H, E), (4H, H), (4H,))
        "w_ih_f": init(ks[1], (4 * H, E)),
        "w_hh_f": init(ks[2], (4 * H, H)),
        "b_ih_f": init(ks[3], (4 * H,)),
        "b_hh_f": init(ks[4], (4 * H,)),
        # backward-direction LSTM
        "w_ih_b": init(ks[5], (4 * H, E)),
        "w_hh_b": init(ks[6], (4 * H, H)),
        "b_ih_b": init(ks[7], (4 * H,)),
        "b_hh_b": init(ks[8], (4 * H,)),
        # final linear: hidden_dim*2 -> output_size
        "w_fc": init(ks[9], (O, 2 * H)),
        "b_fc": init(ks[10], (O,)),
    }

    # Token ids, lengths (sorted descending, as pack_padded_sequence requires),
    # and one target index per example (target_index < length).
    lengths = jnp.array([8, 7, 5, 3], dtype=jnp.int32)
    targets = jnp.array([2, 6, 0, 1], dtype=jnp.int32)
    tokens = jax.random.randint(ks[11], (B, T), 2, V).astype(jnp.int32)
    pad_mask = jnp.arange(T)[None, :] >= lengths[:, None]
    tokens = jnp.where(pad_mask, PADDING_IDX, tokens)

    prepped = jax.tree_util.tree_map(jax.block_until_ready,
                                     prepare_params(params))   # one-time, cached

    out = my_lstm_forward(prepped, tokens, lengths, targets)
    out = jax.block_until_ready(out)

    ref = reference_forward(params, tokens, lengths, targets)
    assert out.shape == (B, O) and out.dtype == jnp.float32
    assert jnp.allclose(out, ref, atol=1e-2, rtol=1e-2), "mismatch vs JAX reference"

    print("KERNEL_OK")
</pallas_src>

<mosaic_0001>
module attributes {stable_mosaic.version = 11 : i64} {
  func.func @bilstm_kernel(%arg0: memref<64x128xf32, #tpu.memory_space<vmem>>, %arg1: memref<8x1xi32, #tpu.memory_space<vmem>>, %arg2: memref<8x1xi32, #tpu.memory_space<vmem>>, %arg3: memref<32x256xbf16, #tpu.memory_space<vmem>>, %arg4: memref<32x16xf32, #tpu.memory_space<vmem>>, %arg5: memref<1x8xf32, #tpu.memory_space<vmem>>, %arg6: memref<4x8xf32, #tpu.memory_space<vmem>>) attributes {dimension_semantics = [], scalar_prefetch = 0 : i64, scratch_operands = 0 : i64, tpu.core_type = #tpu.core_type<tc>} {
    %c0 = arith.constant 0 : index
    %c0_0 = arith.constant 0 : index
    %0 = vector.load %arg0[%c0, %c0_0] : memref<64x128xf32, #tpu.memory_space<vmem>>, vector<64x128xf32>
    %c0_1 = arith.constant 0 : index
    %c0_2 = arith.constant 0 : index
    %1 = vector.load %arg1[%c0_1, %c0_2] : memref<8x1xi32, #tpu.memory_space<vmem>>, vector<8x1xi32>
    %c0_3 = arith.constant 0 : index
    %c0_4 = arith.constant 0 : index
    %2 = vector.load %arg2[%c0_3, %c0_4] : memref<8x1xi32, #tpu.memory_space<vmem>>, vector<8x1xi32>
    %c0_5 = arith.constant 0 : index
    %c0_6 = arith.constant 0 : index
    %3 = vector.load %arg3[%c0_5, %c0_6] : memref<32x256xbf16, #tpu.memory_space<vmem>>, vector<32x256xbf16>
    %4 = tpu.iota {dimensions = array<i32: 0>} : vector<8x1xi32>
    %c4_i32 = arith.constant 4 : i32
    %5 = vector.broadcast %c4_i32 : i32 to vector<8x1xi32>
    %6 = arith.cmpi slt, %4, %5 : vector<8x1xi32>
    %cst = arith.constant 0.000000e+00 : f32
    %7 = vector.broadcast %cst : f32 to vector<8x32xf32>
    %cst_7 = arith.constant 0.000000e+00 : f32
    %8 = vector.broadcast %cst_7 : f32 to vector<8x32xf32>
    %cst_8 = arith.constant 0.000000e+00 : f32
    %9 = vector.broadcast %cst_8 : f32 to vector<8x32xf32>
    %c0_i32 = arith.constant 0 : i32
    %c7_i32 = arith.constant 7 : i32
    %10 = vector.broadcast %c0_i32 : i32 to vector<8x1xi32>
    %11 = vector.broadcast %c7_i32 : i32 to vector<8x1xi32>
    %12 = arith.select %6, %10, %11 : vector<8x1xi1>, vector<8x1xi32>
    %13 = vector.extract_strided_slice %0 {offsets = [0, 0], sizes = [8, 128], strides = [1, 1]} : vector<64x128xf32> to vector<8x128xf32>
    %14 = arith.negf %13 : vector<8x128xf32>
    %15 = math.exp %14 : vector<8x128xf32>
    %cst_9 = arith.constant 1.000000e+00 : f32
    %16 = vector.broadcast %cst_9 : f32 to vector<8x128xf32>
    %17 = arith.addf %16, %15 : vector<8x128xf32>
    %18 = arith.divf %16, %17 : vector<8x128xf32>
    %19 = math.tanh %13 : vector<8x128xf32>
    %20 = vector.extract_strided_slice %18 {offsets = [0, 0], sizes = [8, 32], strides = [1, 1]} : vector<8x128xf32> to vector<8x32xf32>
    %21 = vector.extract_strided_slice %18 {offsets = [0, 32], sizes = [8, 32], strides = [1, 1]} : vector<8x128xf32> to vector<8x32xf32>
    %22 = vector.extract_strided_slice %19 {offsets = [0, 64], sizes = [8, 32], strides = [1, 1]} : vector<8x128xf32> to vector<8x32xf32>
    %23 = vector.extract_strided_slice %18 {offsets = [0, 96], sizes = [8, 32], strides = [1, 1]} : vector<8x128xf32> to vector<8x32xf32>
    %24 = arith.mulf %21, %8 : vector<8x32xf32>
    %25 = arith.mulf %20, %22 : vector<8x32xf32>
    %26 = arith.addf %24, %25 : vector<8x32xf32>
    %27 = math.tanh %26 : vector<8x32xf32>
    %28 = arith.mulf %23, %27 : vector<8x32xf32>
    %29 = arith.cmpi slt, %12, %1 : vector<8x1xi32>
    %30 = vector.shape_cast %29 : vector<8x1xi1> to vector<8x1xi1>
    %31 = vector.broadcast %30 : vector<8x1xi1> to vector<8x32xi1>
    %32 = arith.select %31, %28, %7 : vector<8x32xi1>, vector<8x32xf32>
    %33 = vector.shape_cast %29 : vector<8x1xi1> to vector<8x1xi1>
    %34 = vector.broadcast %33 : vector<8x1xi1> to vector<8x32xi1>
    %35 = arith.select %34, %26, %8 : vector<8x32xi1>, vector<8x32xf32>
    %36 = arith.cmpi eq, %12, %2 : vector<8x1xi32>
    %37 = vector.shape_cast %36 : vector<8x1xi1> to vector<8x1xi1>
    %38 = vector.broadcast %37 : vector<8x1xi1> to vector<8x32xi1>
    %39 = arith.select %38, %32, %9 : vector<8x32xi1>, vector<8x32xf32>
    %40 = arith.truncf %32 : vector<8x32xf32> to vector<8x32xbf16>
    %c1_i32 = arith.constant 1 : i32
    %c6_i32 = arith.constant 6 : i32
    %41 = vector.broadcast %c1_i32 : i32 to vector<8x1xi32>
    %42 = vector.broadcast %c6_i32 : i32 to vector<8x1xi32>
    %43 = arith.select %6, %41, %42 : vector<8x1xi1>, vector<8x1xi32>
    %44 = vector.extract_strided_slice %0 {offsets = [8, 0], sizes = [8, 128], strides = [1, 1]} : vector<64x128xf32> to vector<8x128xf32>
    %cst_10 = arith.constant dense<0.000000e+00> : vector<8x256xf32>
    %45 = tpu.matmul %40, %3, %cst_10 {dimension_numbers = #tpu.dot_dimension_numbers<[1], [0], [0], [1], [0, 0, 1, 1], [], []>} : vector<8x32xbf16>, vector<32x256xbf16>, vector<8x256xf32> -> vector<8x256xf32>
    %46 = vector.extract_strided_slice %45 {offsets = [0, 0], sizes = [8, 128], strides = [1, 1]} : vector<8x256xf32> to vector<8x128xf32>
    %47 = vector.extract_strided_slice %45 {offsets = [0, 128], sizes = [8, 128], strides = [1, 1]} : vector<8x256xf32> to vector<8x128xf32>
    %48 = vector.shape_cast %6 : vector<8x1xi1> to vector<8x1xi1>
    %49 = vector.broadcast %48 : vector<8x1xi1> to vector<8x128xi1>
    %50 = arith.select %49, %46, %47 : vector<8x128xi1>, vector<8x128xf32>
    %51 = arith.addf %44, %50 : vector<8x128xf32>
    %52 = arith.negf %51 : vector<8x128xf32>
    %53 = math.exp %52 : vector<8x128xf32>
    %cst_11 = arith.constant 1.000000e+00 : f32
    %54 = vector.broadcast %cst_11 : f32 to vector<8x128xf32>
    %55 = arith.addf %54, %53 : vector<8x128xf32>
    %56 = arith.divf %54, %55 : vector<8x128xf32>
    %57 = math.tanh %51 : vector<8x128xf32>
    %58 = vector.extract_strided_slice %56 {offsets = [0, 0], sizes = [8, 32], strides = [1, 1]} : vector<8x128xf32> to vector<8x32xf32>
    %59 = vector.extract_strided_slice %56 {offsets = [0, 32], sizes = [8, 32], strides = [1, 1]} : vector<8x128xf32> to vector<8x32xf32>
    %60 = vector.extract_strided_slice %57 {offsets = [0, 64], sizes = [8, 32], strides = [1, 1]} : vector<8x128xf32> to vector<8x32xf32>
    %61 = vector.extract_strided_slice %56 {offsets = [0, 96], sizes = [8, 32], strides = [1, 1]} : vector<8x128xf32> to vector<8x32xf32>
    %62 = arith.mulf %59, %35 : vector<8x32xf32>
    %63 = arith.mulf %58, %60 : vector<8x32xf32>
    %64 = arith.addf %62, %63 : vector<8x32xf32>
    %65 = math.tanh %64 : vector<8x32xf32>
    %66 = arith.mulf %61, %65 : vector<8x32xf32>
    %67 = arith.cmpi slt, %43, %1 : vector<8x1xi32>
    %68 = vector.shape_cast %67 : vector<8x1xi1> to vector<8x1xi1>
    %69 = vector.broadcast %68 : vector<8x1xi1> to vector<8x32xi1>
    %70 = arith.select %69, %66, %32 : vector<8x32xi1>, vector<8x32xf32>
    %71 = vector.shape_cast %67 : vector<8x1xi1> to vector<8x1xi1>
    %72 = vector.broadcast %71 : vector<8x1xi1> to vector<8x32xi1>
    %73 = arith.select %72, %64, %35 : vector<8x32xi1>, vector<8x32xf32>
    %74 = arith.cmpi eq, %43, %2 : vector<8x1xi32>
    %75 = vector.shape_cast %74 : vector<8x1xi1> to vector<8x1xi1>
    %76 = vector.broadcast %75 : vector<8x1xi1> to vector<8x32xi1>
    %77 = arith.select %76, %70, %39 : vector<8x32xi1>, vector<8x32xf32>
    %78 = arith.truncf %70 : vector<8x32xf32> to vector<8x32xbf16>
    %c2_i32 = arith.constant 2 : i32
    %c5_i32 = arith.constant 5 : i32
    %79 = vector.broadcast %c2_i32 : i32 to vector<8x1xi32>
    %80 = vector.broadcast %c5_i32 : i32 to vector<8x1xi32>
    %81 = arith.select %6, %79, %80 : vector<8x1xi1>, vector<8x1xi32>
    %82 = vector.extract_strided_slice %0 {offsets = [16, 0], sizes = [8, 128], strides = [1, 1]} : vector<64x128xf32> to vector<8x128xf32>
    %cst_12 = arith.constant dense<0.000000e+00> : vector<8x256xf32>
    %83 = tpu.matmul %78, %3, %cst_12 {dimension_numbers = #tpu.dot_dimension_numbers<[1], [0], [0], [1], [0, 0, 1, 1], [], []>} : vector<8x32xbf16>, vector<32x256xbf16>, vector<8x256xf32> -> vector<8x256xf32>
    %84 = vector.extract_strided_slice %83 {offsets = [0, 0], sizes = [8, 128], strides = [1, 1]} : vector<8x256xf32> to vector<8x128xf32>
    %85 = vector.extract_strided_slice %83 {offsets = [0, 128], sizes = [8, 128], strides = [1, 1]} : vector<8x256xf32> to vector<8x128xf32>
    %86 = vector.shape_cast %6 : vector<8x1xi1> to vector<8x1xi1>
    %87 = vector.broadcast %86 : vector<8x1xi1> to vector<8x128xi1>
    %88 = arith.select %87, %84, %85 : vector<8x128xi1>, vector<8x128xf32>
    %89 = arith.addf %82, %88 : vector<8x128xf32>
    %90 = arith.negf %89 : vector<8x128xf32>
    %91 = math.exp %90 : vector<8x128xf32>
    %cst_13 = arith.constant 1.000000e+00 : f32
    %92 = vector.broadcast %cst_13 : f32 to vector<8x128xf32>
    %93 = arith.addf %92, %91 : vector<8x128xf32>
    %94 = arith.divf %92, %93 : vector<8x128xf32>
    %95 = math.tanh %89 : vector<8x128xf32>
    %96 = vector.extract_strided_slice %94 {offsets = [0, 0], sizes = [8, 32], strides = [1, 1]} : vector<8x128xf32> to vector<8x32xf32>
    %97 = vector.extract_strided_slice %94 {offsets = [0, 32], sizes = [8, 32], strides = [1, 1]} : vector<8x128xf32> to vector<8x32xf32>
    %98 = vector.extract_strided_slice %95 {offsets = [0, 64], sizes = [8, 32], strides = [1, 1]} : vector<8x128xf32> to vector<8x32xf32>
    %99 = vector.extract_strided_slice %94 {offsets = [0, 96], sizes = [8, 32], strides = [1, 1]} : vector<8x128xf32> to vector<8x32xf32>
    %100 = arith.mulf %97, %73 : vector<8x32xf32>
    %101 = arith.mulf %96, %98 : vector<8x32xf32>
    %102 = arith.addf %100, %101 : vector<8x32xf32>
    %103 = math.tanh %102 : vector<8x32xf32>
    %104 = arith.mulf %99, %103 : vector<8x32xf32>
    %105 = arith.cmpi slt, %81, %1 : vector<8x1xi32>
    %106 = vector.shape_cast %105 : vector<8x1xi1> to vector<8x1xi1>
    %107 = vector.broadcast %106 : vector<8x1xi1> to vector<8x32xi1>
    %108 = arith.select %107, %104, %70 : vector<8x32xi1>, vector<8x32xf32>
    %109 = vector.shape_cast %105 : vector<8x1xi1> to vector<8x1xi1>
    %110 = vector.broadcast %109 : vector<8x1xi1> to vector<8x32xi1>
    %111 = arith.select %110, %102, %73 : vector<8x32xi1>, vector<8x32xf32>
    %112 = arith.cmpi eq, %81, %2 : vector<8x1xi32>
    %113 = vector.shape_cast %112 : vector<8x1xi1> to vector<8x1xi1>
    %114 = vector.broadcast %113 : vector<8x1xi1> to vector<8x32xi1>
    %115 = arith.select %114, %108, %77 : vector<8x32xi1>, vector<8x32xf32>
    %116 = arith.truncf %108 : vector<8x32xf32> to vector<8x32xbf16>
    %c3_i32 = arith.constant 3 : i32
    %c4_i32_14 = arith.constant 4 : i32
    %117 = vector.broadcast %c3_i32 : i32 to vector<8x1xi32>
    %118 = vector.broadcast %c4_i32_14 : i32 to vector<8x1xi32>
    %119 = arith.select %6, %117, %118 : vector<8x1xi1>, vector<8x1xi32>
    %120 = vector.extract_strided_slice %0 {offsets = [24, 0], sizes = [8, 128], strides = [1, 1]} : vector<64x128xf32> to vector<8x128xf32>
    %cst_15 = arith.constant dense<0.000000e+00> : vector<8x256xf32>
    %121 = tpu.matmul %116, %3, %cst_15 {dimension_numbers = #tpu.dot_dimension_numbers<[1], [0], [0], [1], [0, 0, 1, 1], [], []>} : vector<8x32xbf16>, vector<32x256xbf16>, vector<8x256xf32> -> vector<8x256xf32>
    %122 = vector.extract_strided_slice %121 {offsets = [0, 0], sizes = [8, 128], strides = [1, 1]} : vector<8x256xf32> to vector<8x128xf32>
    %123 = vector.extract_strided_slice %121 {offsets = [0, 128], sizes = [8, 128], strides = [1, 1]} : vector<8x256xf32> to vector<8x128xf32>
    %124 = vector.shape_cast %6 : vector<8x1xi1> to vector<8x1xi1>
    %125 = vector.broadcast %124 : vector<8x1xi1> to vector<8x128xi1>
    %126 = arith.select %125, %122, %123 : vector<8x128xi1>, vector<8x128xf32>
    %127 = arith.addf %120, %126 : vector<8x128xf32>
    %128 = arith.negf %127 : vector<8x128xf32>
    %129 = math.exp %128 : vector<8x128xf32>
    %cst_16 = arith.constant 1.000000e+00 : f32
    %130 = vector.broadcast %cst_16 : f32 to vector<8x128xf32>
    %131 = arith.addf %130, %129 : vector<8x128xf32>
    %132 = arith.divf %130, %131 : vector<8x128xf32>
    %133 = math.tanh %127 : vector<8x128xf32>
    %134 = vector.extract_strided_slice %132 {offsets = [0, 0], sizes = [8, 32], strides = [1, 1]} : vector<8x128xf32> to vector<8x32xf32>
    %135 = vector.extract_strided_slice %132 {offsets = [0, 32], sizes = [8, 32], strides = [1, 1]} : vector<8x128xf32> to vector<8x32xf32>
    %136 = vector.extract_strided_slice %133 {offsets = [0, 64], sizes = [8, 32], strides = [1, 1]} : vector<8x128xf32> to vector<8x32xf32>
    %137 = vector.extract_strided_slice %132 {offsets = [0, 96], sizes = [8, 32], strides = [1, 1]} : vector<8x128xf32> to vector<8x32xf32>
    %138 = arith.mulf %135, %111 : vector<8x32xf32>
    %139 = arith.mulf %134, %136 : vector<8x32xf32>
    %140 = arith.addf %138, %139 : vector<8x32xf32>
    %141 = math.tanh %140 : vector<8x32xf32>
    %142 = arith.mulf %137, %141 : vector<8x32xf32>
    %143 = arith.cmpi slt, %119, %1 : vector<8x1xi32>
    %144 = vector.shape_cast %143 : vector<8x1xi1> to vector<8x1xi1>
    %145 = vector.broadcast %144 : vector<8x1xi1> to vector<8x32xi1>
    %146 = arith.select %145, %142, %108 : vector<8x32xi1>, vector<8x32xf32>
    %147 = vector.shape_cast %143 : vector<8x1xi1> to vector<8x1xi1>
    %148 = vector.broadcast %147 : vector<8x1xi1> to vector<8x32xi1>
    %149 = arith.select %148, %140, %111 : vector<8x32xi1>, vector<8x32xf32>
    %150 = arith.cmpi eq, %119, %2 : vector<8x1xi32>
    %151 = vector.shape_cast %150 : vector<8x1xi1> to vector<8x1xi1>
    %152 = vector.broadcast %151 : vector<8x1xi1> to vector<8x32xi1>
    %153 = arith.select %152, %146, %115 : vector<8x32xi1>, vector<8x32xf32>
    %154 = arith.truncf %146 : vector<8x32xf32> to vector<8x32xbf16>
    %c4_i32_17 = arith.constant 4 : i32
    %c3_i32_18 = arith.constant 3 : i32
    %155 = vector.broadcast %c4_i32_17 : i32 to vector<8x1xi32>
    %156 = vector.broadcast %c3_i32_18 : i32 to vector<8x1xi32>
    %157 = arith.select %6, %155, %156 : vector<8x1xi1>, vector<8x1xi32>
    %158 = vector.extract_strided_slice %0 {offsets = [32, 0], sizes = [8, 128], strides = [1, 1]} : vector<64x128xf32> to vector<8x128xf32>
    %cst_19 = arith.constant dense<0.000000e+00> : vector<8x256xf32>
    %159 = tpu.matmul %154, %3, %cst_19 {dimension_numbers = #tpu.dot_dimension_numbers<[1], [0], [0], [1], [0, 0, 1, 1], [], []>} : vector<8x32xbf16>, vector<32x256xbf16>, vector<8x256xf32> -> vector<8x256xf32>
    %160 = vector.extract_strided_slice %159 {offsets = [0, 0], sizes = [8, 128], strides = [1, 1]} : vector<8x256xf32> to vector<8x128xf32>
    %161 = vector.extract_strided_slice %159 {offsets = [0, 128], sizes = [8, 128], strides = [1, 1]} : vector<8x256xf32> to vector<8x128xf32>
    %162 = vector.shape_cast %6 : vector<8x1xi1> to vector<8x1xi1>
    %163 = vector.broadcast %162 : vector<8x1xi1> to vector<8x128xi1>
    %164 = arith.select %163, %160, %161 : vector<8x128xi1>, vector<8x128xf32>
    %165 = arith.addf %158, %164 : vector<8x128xf32>
    %166 = arith.negf %165 : vector<8x128xf32>
    %167 = math.exp %166 : vector<8x128xf32>
    %cst_20 = arith.constant 1.000000e+00 : f32
    %168 = vector.broadcast %cst_20 : f32 to vector<8x128xf32>
    %169 = arith.addf %168, %167 : vector<8x128xf32>
    %170 = arith.divf %168, %169 : vector<8x128xf32>
    %171 = math.tanh %165 : vector<8x128xf32>
    %172 = vector.extract_strided_slice %170 {offsets = [0, 0], sizes = [8, 32], strides = [1, 1]} : vector<8x128xf32> to vector<8x32xf32>
    %173 = vector.extract_strided_slice %170 {offsets = [0, 32], sizes = [8, 32], strides = [1, 1]} : vector<8x128xf32> to vector<8x32xf32>
    %174 = vector.extract_strided_slice %171 {offsets = [0, 64], sizes = [8, 32], strides = [1, 1]} : vector<8x128xf32> to vector<8x32xf32>
    %175 = vector.extract_strided_slice %170 {offsets = [0, 96], sizes = [8, 32], strides = [1, 1]} : vector<8x128xf32> to vector<8x32xf32>
    %176 = arith.mulf %173, %149 : vector<8x32xf32>
    %177 = arith.mulf %172, %174 : vector<8x32xf32>
    %178 = arith.addf %176, %177 : vector<8x32xf32>
    %179 = math.tanh %178 : vector<8x32xf32>
    %180 = arith.mulf %175, %179 : vector<8x32xf32>
    %181 = arith.cmpi slt, %157, %1 : vector<8x1xi32>
    %182 = vector.shape_cast %181 : vector<8x1xi1> to vector<8x1xi1>
    %183 = vector.broadcast %182 : vector<8x1xi1> to vector<8x32xi1>
    %184 = arith.select %183, %180, %146 : vector<8x32xi1>, vector<8x32xf32>
    %185 = vector.shape_cast %181 : vector<8x1xi1> to vector<8x1xi1>
    %186 = vector.broadcast %185 : vector<8x1xi1> to vector<8x32xi1>
    %187 = arith.select %186, %178, %149 : vector<8x32xi1>, vector<8x32xf32>
    %188 = arith.cmpi eq, %157, %2 : vector<8x1xi32>
    %189 = vector.shape_cast %188 : vector<8x1xi1> to vector<8x1xi1>
    %190 = vector.broadcast %189 : vector<8x1xi1> to vector<8x32xi1>
    %191 = arith.select %190, %184, %153 : vector<8x32xi1>, vector<8x32xf32>
    %192 = arith.truncf %184 : vector<8x32xf32> to vector<8x32xbf16>
    %c5_i32_21 = arith.constant 5 : i32
    %c2_i32_22 = arith.constant 2 : i32
    %193 = vector.broadcast %c5_i32_21 : i32 to vector<8x1xi32>
    %194 = vector.broadcast %c2_i32_22 : i32 to vector<8x1xi32>
    %195 = arith.select %6, %193, %194 : vector<8x1xi1>, vector<8x1xi32>
    %196 = vector.extract_strided_slice %0 {offsets = [40, 0], sizes = [8, 128], strides = [1, 1]} : vector<64x128xf32> to vector<8x128xf32>
    %cst_23 = arith.constant dense<0.000000e+00> : vector<8x256xf32>
    %197 = tpu.matmul %192, %3, %cst_23 {dimension_numbers = #tpu.dot_dimension_numbers<[1], [0], [0], [1], [0, 0, 1, 1], [], []>} : vector<8x32xbf16>, vector<32x256xbf16>, vector<8x256xf32> -> vector<8x256xf32>
    %198 = vector.extract_strided_slice %197 {offsets = [0, 0], sizes = [8, 128], strides = [1, 1]} : vector<8x256xf32> to vector<8x128xf32>
    %199 = vector.extract_strided_slice %197 {offsets = [0, 128], sizes = [8, 128], strides = [1, 1]} : vector<8x256xf32> to vector<8x128xf32>
    %200 = vector.shape_cast %6 : vector<8x1xi1> to vector<8x1xi1>
    %201 = vector.broadcast %200 : vector<8x1xi1> to vector<8x128xi1>
    %202 = arith.select %201, %198, %199 : vector<8x128xi1>, vector<8x128xf32>
    %203 = arith.addf %196, %202 : vector<8x128xf32>
    %204 = arith.negf %203 : vector<8x128xf32>
    %205 = math.exp %204 : vector<8x128xf32>
    %cst_24 = arith.constant 1.000000e+00 : f32
    %206 = vector.broadcast %cst_24 : f32 to vector<8x128xf32>
    %207 = arith.addf %206, %205 : vector<8x128xf32>
    %208 = arith.divf %206, %207 : vector<8x128xf32>
    %209 = math.tanh %203 : vector<8x128xf32>
    %210 = vector.extract_strided_slice %208 {offsets = [0, 0], sizes = [8, 32], strides = [1, 1]} : vector<8x128xf32> to vector<8x32xf32>
    %211 = vector.extract_strided_slice %208 {offsets = [0, 32], sizes = [8, 32], strides = [1, 1]} : vector<8x128xf32> to vector<8x32xf32>
    %212 = vector.extract_strided_slice %209 {offsets = [0, 64], sizes = [8, 32], strides = [1, 1]} : vector<8x128xf32> to vector<8x32xf32>
    %213 = vector.extract_strided_slice %208 {offsets = [0, 96], sizes = [8, 32], strides = [1, 1]} : vector<8x128xf32> to vector<8x32xf32>
    %214 = arith.mulf %211, %187 : vector<8x32xf32>
    %215 = arith.mulf %210, %212 : vector<8x32xf32>
    %216 = arith.addf %214, %215 : vector<8x32xf32>
    %217 = math.tanh %216 : vector<8x32xf32>
    %218 = arith.mulf %213, %217 : vector<8x32xf32>
    %219 = arith.cmpi slt, %195, %1 : vector<8x1xi32>
    %220 = vector.shape_cast %219 : vector<8x1xi1> to vector<8x1xi1>
    %221 = vector.broadcast %220 : vector<8x1xi1> to vector<8x32xi1>
    %222 = arith.select %221, %218, %184 : vector<8x32xi1>, vector<8x32xf32>
    %223 = vector.shape_cast %219 : vector<8x1xi1> to vector<8x1xi1>
    %224 = vector.broadcast %223 : vector<8x1xi1> to vector<8x32xi1>
    %225 = arith.select %224, %216, %187 : vector<8x32xi1>, vector<8x32xf32>
    %226 = arith.cmpi eq, %195, %2 : vector<8x1xi32>
    %227 = vector.shape_cast %226 : vector<8x1xi1> to vector<8x1xi1>
    %228 = vector.broadcast %227 : vector<8x1xi1> to vector<8x32xi1>
    %229 = arith.select %228, %222, %191 : vector<8x32xi1>, vector<8x32xf32>
    %230 = arith.truncf %222 : vector<8x32xf32> to vector<8x32xbf16>
    %c6_i32_25 = arith.constant 6 : i32
    %c1_i32_26 = arith.constant 1 : i32
    %231 = vector.broadcast %c6_i32_25 : i32 to vector<8x1xi32>
    %232 = vector.broadcast %c1_i32_26 : i32 to vector<8x1xi32>
    %233 = arith.select %6, %231, %232 : vector<8x1xi1>, vector<8x1xi32>
    %234 = vector.extract_strided_slice %0 {offsets = [48, 0], sizes = [8, 128], strides = [1, 1]} : vector<64x128xf32> to vector<8x128xf32>
    %cst_27 = arith.constant dense<0.000000e+00> : vector<8x256xf32>
    %235 = tpu.matmul %230, %3, %cst_27 {dimension_numbers = #tpu.dot_dimension_numbers<[1], [0], [0], [1], [0, 0, 1, 1], [], []>} : vector<8x32xbf16>, vector<32x256xbf16>, vector<8x256xf32> -> vector<8x256xf32>
    %236 = vector.extract_strided_slice %235 {offsets = [0, 0], sizes = [8, 128], strides = [1, 1]} : vector<8x256xf32> to vector<8x128xf32>
    %237 = vector.extract_strided_slice %235 {offsets = [0, 128], sizes = [8, 128], strides = [1, 1]} : vector<8x256xf32> to vector<8x128xf32>
    %238 = vector.shape_cast %6 : vector<8x1xi1> to vector<8x1xi1>
    %239 = vector.broadcast %238 : vector<8x1xi1> to vector<8x128xi1>
    %240 = arith.select %239, %236, %237 : vector<8x128xi1>, vector<8x128xf32>
    %241 = arith.addf %234, %240 : vector<8x128xf32>
    %242 = arith.negf %241 : vector<8x128xf32>
    %243 = math.exp %242 : vector<8x128xf32>
    %cst_28 = arith.constant 1.000000e+00 : f32
    %244 = vector.broadcast %cst_28 : f32 to vector<8x128xf32>
    %245 = arith.addf %244, %243 : vector<8x128xf32>
    %246 = arith.divf %244, %245 : vector<8x128xf32>
    %247 = math.tanh %241 : vector<8x128xf32>
    %248 = vector.extract_strided_slice %246 {offsets = [0, 0], sizes = [8, 32], strides = [1, 1]} : vector<8x128xf32> to vector<8x32xf32>
    %249 = vector.extract_strided_slice %246 {offsets = [0, 32], sizes = [8, 32], strides = [1, 1]} : vector<8x128xf32> to vector<8x32xf32>
    %250 = vector.extract_strided_slice %247 {offsets = [0, 64], sizes = [8, 32], strides = [1, 1]} : vector<8x128xf32> to vector<8x32xf32>
    %251 = vector.extract_strided_slice %246 {offsets = [0, 96], sizes = [8, 32], strides = [1, 1]} : vector<8x128xf32> to vector<8x32xf32>
    %252 = arith.mulf %249, %225 : vector<8x32xf32>
    %253 = arith.mulf %248, %250 : vector<8x32xf32>
    %254 = arith.addf %252, %253 : vector<8x32xf32>
    %255 = math.tanh %254 : vector<8x32xf32>
    %256 = arith.mulf %251, %255 : vector<8x32xf32>
    %257 = arith.cmpi slt, %233, %1 : vector<8x1xi32>
    %258 = vector.shape_cast %257 : vector<8x1xi1> to vector<8x1xi1>
    %259 = vector.broadcast %258 : vector<8x1xi1> to vector<8x32xi1>
    %260 = arith.select %259, %256, %222 : vector<8x32xi1>, vector<8x32xf32>
    %261 = vector.shape_cast %257 : vector<8x1xi1> to vector<8x1xi1>
    %262 = vector.broadcast %261 : vector<8x1xi1> to vector<8x32xi1>
    %263 = arith.select %262, %254, %225 : vector<8x32xi1>, vector<8x32xf32>
    %264 = arith.cmpi eq, %233, %2 : vector<8x1xi32>
    %265 = vector.shape_cast %264 : vector<8x1xi1> to vector<8x1xi1>
    %266 = vector.broadcast %265 : vector<8x1xi1> to vector<8x32xi1>
    %267 = arith.select %266, %260, %229 : vector<8x32xi1>, vector<8x32xf32>
    %268 = arith.truncf %260 : vector<8x32xf32> to vector<8x32xbf16>
    %c7_i32_29 = arith.constant 7 : i32
    %c0_i32_30 = arith.constant 0 : i32
    %269 = vector.broadcast %c7_i32_29 : i32 to vector<8x1xi32>
    %270 = vector.broadcast %c0_i32_30 : i32 to vector<8x1xi32>
    %271 = arith.select %6, %269, %270 : vector<8x1xi1>, vector<8x1xi32>
    %272 = vector.extract_strided_slice %0 {offsets = [56, 0], sizes = [8, 128], strides = [1, 1]} : vector<64x128xf32> to vector<8x128xf32>
    %cst_31 = arith.constant dense<0.000000e+00> : vector<8x256xf32>
    %273 = tpu.matmul %268, %3, %cst_31 {dimension_numbers = #tpu.dot_dimension_numbers<[1], [0], [0], [1], [0, 0, 1, 1], [], []>} : vector<8x32xbf16>, vector<32x256xbf16>, vector<8x256xf32> -> vector<8x256xf32>
    %274 = vector.extract_strided_slice %273 {offsets = [0, 0], sizes = [8, 128], strides = [1, 1]} : vector<8x256xf32> to vector<8x128xf32>
    %275 = vector.extract_strided_slice %273 {offsets = [0, 128], sizes = [8, 128], strides = [1, 1]} : vector<8x256xf32> to vector<8x128xf32>
    %276 = vector.shape_cast %6 : vector<8x1xi1> to vector<8x1xi1>
    %277 = vector.broadcast %276 : vector<8x1xi1> to vector<8x128xi1>
    %278 = arith.select %277, %274, %275 : vector<8x128xi1>, vector<8x128xf32>
    %279 = arith.addf %272, %278 : vector<8x128xf32>
    %280 = arith.negf %279 : vector<8x128xf32>
    %281 = math.exp %280 : vector<8x128xf32>
    %cst_32 = arith.constant 1.000000e+00 : f32
    %282 = vector.broadcast %cst_32 : f32 to vector<8x128xf32>
    %283 = arith.addf %282, %281 : vector<8x128xf32>
    %284 = arith.divf %282, %283 : vector<8x128xf32>
    %285 = math.tanh %279 : vector<8x128xf32>
    %286 = vector.extract_strided_slice %284 {offsets = [0, 0], sizes = [8, 32], strides = [1, 1]} : vector<8x128xf32> to vector<8x32xf32>
    %287 = vector.extract_strided_slice %284 {offsets = [0, 32], sizes = [8, 32], strides = [1, 1]} : vector<8x128xf32> to vector<8x32xf32>
    %288 = vector.extract_strided_slice %285 {offsets = [0, 64], sizes = [8, 32], strides = [1, 1]} : vector<8x128xf32> to vector<8x32xf32>
    %289 = vector.extract_strided_slice %284 {offsets = [0, 96], sizes = [8, 32], strides = [1, 1]} : vector<8x128xf32> to vector<8x32xf32>
    %290 = arith.mulf %287, %263 : vector<8x32xf32>
    %291 = arith.mulf %286, %288 : vector<8x32xf32>
    %292 = arith.addf %290, %291 : vector<8x32xf32>
    %293 = math.tanh %292 : vector<8x32xf32>
    %294 = arith.mulf %289, %293 : vector<8x32xf32>
    %295 = arith.cmpi slt, %271, %1 : vector<8x1xi32>
    %296 = vector.shape_cast %295 : vector<8x1xi1> to vector<8x1xi1>
    %297 = vector.broadcast %296 : vector<8x1xi1> to vector<8x32xi1>
    %298 = arith.select %297, %294, %260 : vector<8x32xi1>, vector<8x32xf32>
    %299 = arith.cmpi eq, %271, %2 : vector<8x1xi32>
    %300 = vector.shape_cast %299 : vector<8x1xi1> to vector<8x1xi1>
    %301 = vector.broadcast %300 : vector<8x1xi1> to vector<8x32xi1>
    %302 = arith.select %301, %298, %267 : vector<8x32xi1>, vector<8x32xf32>
    %c0_33 = arith.constant 0 : index
    %c0_34 = arith.constant 0 : index
    %303 = vector.load %arg4[%c0_33, %c0_34] : memref<32x16xf32, #tpu.memory_space<vmem>>, vector<32x16xf32>
    %cst_35 = arith.constant dense<0.000000e+00> : vector<8x16xf32>
    %304 = tpu.matmul %302, %303, %cst_35 {dimension_numbers = #tpu.dot_dimension_numbers<[1], [0], [0], [1], [0, 0, 1, 1], [], []>} : vector<8x32xf32>, vector<32x16xf32>, vector<8x16xf32> -> vector<8x16xf32>
    %305 = vector.extract_strided_slice %304 {offsets = [0, 0], sizes = [4, 8], strides = [1, 1]} : vector<8x16xf32> to vector<4x8xf32>
    %306 = vector.extract_strided_slice %304 {offsets = [4, 8], sizes = [4, 8], strides = [1, 1]} : vector<8x16xf32> to vector<4x8xf32>
    %307 = arith.addf %305, %306 : vector<4x8xf32>
    %c0_36 = arith.constant 0 : index
    %c0_37 = arith.constant 0 : index
    %308 = vector.load %arg5[%c0_36, %c0_37] : memref<1x8xf32, #tpu.memory_space<vmem>>, vector<1x8xf32>
    %309 = vector.broadcast %308 : vector<1x8xf32> to vector<4x8xf32>
    %310 = arith.addf %307, %309 : vector<4x8xf32>
    %c0_38 = arith.constant 0 : index
    %c0_39 = arith.constant 0 : index
    %311 = vector.load %arg6[%c0_38, %c0_39] : memref<4x8xf32, #tpu.memory_space<vmem>>, vector<4x8xf32>
    tpu.vector_store %arg6[%c0_38, %c0_39], %310 {strides = array<i32>} : memref<4x8xf32, #tpu.memory_space<vmem>>, vector<4x8xf32>,
    return
  }
}

</mosaic_0001>

<llo_original>
// kernel: _forward.1
$region0: #{_forward.1}
  #allocation0 [shape = 'u32[]', space=smem, size = 0x4, offset = 0x4, fixed_abs, tag = 'smem constant byte address 0x4 - core index']
  #allocation1 [shape = 'u32[72,128]{1,0:T(1,128)}', space=vmem, size = 0x9000, scoped, tag = 'internal scratch']
  %s0 = inlined_call_operand.vmem [shape: f32[64,128], index: 0, kind: input, shape index: {}]
  %s1 = inlined_call_operand.vmem [shape: s32[8,1], index: 1, kind: input, shape index: {}]
  %s2 = inlined_call_operand.vmem [shape: s32[8,1], index: 2, kind: input, shape index: {}]
  %s3 = inlined_call_operand.vmem [shape: bf16[32,256], index: 3, kind: input, shape index: {}]
  %s4 = inlined_call_operand.vmem [shape: f32[32,16], index: 4, kind: input, shape index: {}]
  %s5 = inlined_call_operand.vmem [shape: f32[1,8], index: 5, kind: input, shape index: {}]
  %s6 = inlined_call_operand.hbm [shape: f32[4,8], index: 6, kind: output, shape index: {}]
  %s7 = sld [smem:[#allocation0]]
  $region34: #{_forward.1} parent=0
    _
  %s9 = ssub.s32 1, %s7
  %s10 = scalar_select 0, %s9, %s7
  $region1: #{_forward.1} parent=0
    #allocation2 [shape = 'u8[2048]{0}', space=vmem, size = 0x800, scoped, tag = 'output window, operand 0, single buffered']
    #allocation3 [shape = 's32[1]{0}', space=sflag, size = 0x4, scoped, tag = 'scoped memory for _forward.1']
    %11 = vsyncpa [#allocation3], 0
    // Predicated region
    $region2: #{_forward.1} parent=1 // pred_check
      _
    $region3: #{_forward.1} parent=1 // pred_check_branch
      %13 = sbr.rel (0) target = $region5
    $region4: #{_forward.1} parent=1 // pred_region
      _
    $region5: #{_forward.1} parent=1 // pred_fallthru
      _
    // Predicated region
    $region6: #{_forward.1} parent=1 // pred_check
      _
    $region7: #{_forward.1} parent=1 // pred_check_branch
      %15 = sbr.rel (0) target = $region9
    $region8: #{_forward.1} parent=1 // pred_region
      _
    $region9: #{_forward.1} parent=1 // pred_fallthru
      _
    // Predicated region
    $region10: #{_forward.1} parent=1 // pred_check
      _
    $region11: #{_forward.1} parent=1 // pred_check_branch
      %17 = sbr.rel (0) target = $region13
    $region12: #{_forward.1} parent=1 // pred_region
      _
    $region13: #{_forward.1} parent=1 // pred_fallthru
      _
    // Predicated region
    $region14: #{_forward.1} parent=1 // pred_check
      _
    $region15: #{_forward.1} parent=1 // pred_check_branch
      %19 = sbr.rel (0) target = $region17
    $region16: #{_forward.1} parent=1 // pred_region
      _
    $region17: #{_forward.1} parent=1 // pred_fallthru
      _
    // Predicated region
    $region18: #{_forward.1} parent=1 // pred_check
      _
    $region19: #{_forward.1} parent=1 // pred_check_branch
      %21 = sbr.rel (0) target = $region21
    $region20: #{_forward.1} parent=1 // pred_region
      _
    $region21: #{_forward.1} parent=1 // pred_fallthru
      _
    // Predicated region
    $region22: #{_forward.1} parent=1 // pred_check
      _
    $region23: #{_forward.1} parent=1 // pred_check_branch
      %23 = sbr.rel (0) target = $region25
    $region24: #{_forward.1} parent=1 // pred_region
      _
    $region25: #{_forward.1} parent=1 // pred_fallthru
      _
    %v25 = vld [vmem:[%s0] sm:$0xff]
    %v26 = vld [vmem:[%s0 + $0x8] sm:$0xff]
    %v27 = vld [vmem:[%s0 + $0x10] sm:$0xff]
    %v28 = vld [vmem:[%s0 + $0x18] sm:$0xff]
    %v29 = vld [vmem:[%s0 + $0x20] sm:$0xff]
    %v30 = vld [vmem:[%s0 + $0x28] sm:$0xff]
    %v31 = vld [vmem:[%s0 + $0x30] sm:$0xff]
    %v32 = vld [vmem:[%s0 + $0x38] sm:$0xff]
    %v33 = vld [vmem:[%s1] sm:$0xff]
    %v34 = vld [vmem:[%s2] sm:$0xff]
    %v35 = vld [vmem:[%s3] sm:$0xff]
    %v36 = vld [vmem:[%s3 + $0x8] sm:$0xff]
    %v37 = vld [vmem:[%s3 + $0x10] sm:$0xff]
    %v38 = vld [vmem:[%s3 + $0x18] sm:$0xff]
    %v39 = vlaneseq
    %v40 = vshrl.u32 %v39, 7
    %vm41 = vcmp.lt.s32.totalorder %v40, 4
    %v42 = vsel %vm41, 0, 7
    %v43 = vxor.u32 %v25, 2147483648
    %v44 = vmul.f32 %v43, 1.442695
    %v45 = vpow.pop %v44
    %v46 = vadd.f32 %v45, 1.0
    %v47 = vrcp.pop %v46
    %v48 = vmul.f32 %v46, %v47
    %v49 = vsub.f32 1.0, %v48
    %v50 = vmul.f32 %v47, %v49
    %v51 = vadd.f32 %v47, %v50
    %vm52 = vweird.f32 %v46
    %vm53 = vweird.f32 %v47
    %vm54 = vmor %vm52, %vm53
    %v55 = vsel %vm54, %v47, %v51
    %v56 = vand.u32 2147483647, %v46
    %vm57 = vcmp.eq.f32.partialorder %v56, 8.507059e+37
    %v58 = vand.u32 %v46, 2147483648
    %v59 = vor.u32 1.1754944e-38, %v58
    %v60 = vsel %vm57, %v59, %v55
    %v61 = vmul.f32 1.0, %v60
    %v62 = vtanh.pop %v25
    %v63 = vmul.f32 %v61, 0.0
    %65 = vrot.lane.b32.xlu0 %v62, 64
    %v66 = vpop.permute.xlu0 %65
    %v68 = vmul.f32 %v61, %v66
    %70 = vrot.lane.b32.xlu0 %v68, 32
    %v71 = vpop.permute.xlu0 %70
    %v73 = vadd.f32 %v63, %v71
    %v74 = vtanh.pop %v73
    %76 = vrot.lane.b32.xlu0 %v74, 64
    %v77 = vpop.permute.xlu0 %76
    %v79 = vmul.f32 %v61, %v77
    %vm80 = vcmp.lt.s32.totalorder %v42, %v33
    %v81 = vsel %vm80, 1, 0
    %82 = vset.pattern.permute.xlu0 0
    %83 = vperm.xlu0 %82, %v81
    %v84 = vpop.permute.xlu0 %83
    %vm85 = vcmp.eq.s32.totalorder %v84, 1
    %v86 = vsel %vm85, %v79, 0.0
    %v87 = vsel %vm85, %v73, 0.0
    %vm88 = vcmp.eq.s32.totalorder %v42, %v34
    %v89 = vsel %vm88, 1, 0
    %90 = vset.pattern.permute.xlu0 0
    %91 = vperm.xlu0 %90, %v89
    %v92 = vpop.permute.xlu0 %91
    %vm93 = vcmp.eq.s32.totalorder %v92, 1
    %v94 = vsel %vm93, %v86, 0.0
    %v95 = vpack.c.bf16 %v86, %v86
    %v96 = vsel %vm41, 1, 6
    %98 = vrot.lane.b32.xlu0 %v95, 32
    %v99 = vpop.permute.xlu0 %98
    %v104 = vunpack.c.l.b16 %v35
    %v105 = vunpack.c.h.b16 %v35
    %v106 = vunpack.c.l.b16 %v36
    %v107 = vunpack.c.h.b16 %v36
    %v108 = vunpack.c.l.b16 %v37
    %v109 = vunpack.c.h.b16 %v37
    %v110 = vunpack.c.l.b16 %v38
    %v111 = vunpack.c.h.b16 %v38
    %v112 = vpack.c.b16 %v106, %v104
    %v113 = vpack.c.b16 %v107, %v105
    %v114 = vpack.c.b16 %v110, %v108
    %v115 = vpack.c.b16 %v111, %v109
    %vm120 = vcmask 261120
    %v122 = vsel %vm120, %v99, 0
    %124 = vmatpush.bf16.msra.mxu0 0
    %125 = vmatpush.bf16.msra.mxu0 0
    %126 = vmatpush.bf16.msra.mxu0 0
    %127 = vmatpush.bf16.msra.mxu0 0
    %128 = vmatpush.bf16.msra.mxu0 0
    %129 = vmatpush.bf16.msra.mxu0 0
    %130 = vmatpush.bf16.msra.mxu0 %v114
    %131 = vmatpush.bf16.msra.mxu0 %v112
    %132 = vmatmul.bf16.gmra.mxu0 %v122
    %v133 = vpop.f32.mrf.mxu0
    %v134 = vadd.f32 0.0, %v133
    %v135 = vpop.f32.mrf.mxu0
    %136 = vdwg.mxu0
    %137 = vmatpush.bf16.msra.mxu0 0
    %138 = vmatpush.bf16.msra.mxu0 0
    %139 = vmatpush.bf16.msra.mxu0 0
    %140 = vmatpush.bf16.msra.mxu0 0
    %141 = vmatpush.bf16.msra.mxu0 0
    %142 = vmatpush.bf16.msra.mxu0 0
    %143 = vmatpush.bf16.msra.mxu0 %v115
    %144 = vmatpush.bf16.msra.mxu0 %v113
    %145 = vmatmul.bf16.gmra.mxu0 %v122
    %v146 = vpop.f32.mrf.mxu0
    %v147 = vadd.f32 0.0, %v146
    %v148 = vpop.f32.mrf.mxu0
    %149 = vdwg.mxu0
    %v150 = vsel %vm41, 1, 0
    %vm151 = vcmp.eq.s32.totalorder %v150, 1
    %v152 = vsel %vm151, %v134, %v147
    %v153 = vadd.f32 %v26, %v152
    %v154 = vxor.u32 %v153, 2147483648
    %v155 = vmul.f32 %v154, 1.442695
    %v156 = vpow.pop %v155
    %v157 = vadd.f32 %v156, 1.0
    %v158 = vrcp.pop %v157
    %v159 = vmul.f32 %v157, %v158
    %v160 = vsub.f32 1.0, %v159
    %v161 = vmul.f32 %v158, %v160
    %v162 = vadd.f32 %v158, %v161
    %vm163 = vweird.f32 %v157
    %vm164 = vweird.f32 %v158
    %vm165 = vmor %vm163, %vm164
    %v166 = vsel %vm165, %v158, %v162
    %v167 = vand.u32 2147483647, %v157
    %vm168 = vcmp.eq.f32.partialorder %v167, 8.507059e+37
    %v169 = vand.u32 %v157, 2147483648
    %v170 = vor.u32 1.1754944e-38, %v169
    %v171 = vsel %vm168, %v170, %v166
    %v172 = vmul.f32 1.0, %v171
    %v173 = vtanh.pop %v153
    %v174 = vmul.f32 %v172, %v87
    %176 = vrot.lane.b32.xlu0 %v173, 64
    %v177 = vpop.permute.xlu0 %176
    %v179 = vmul.f32 %v172, %v177
    %181 = vrot.lane.b32.xlu0 %v179, 32
    %v182 = vpop.permute.xlu0 %181
    %v184 = vadd.f32 %v174, %v182
    %v185 = vtanh.pop %v184
    %187 = vrot.lane.b32.xlu0 %v185, 64
    %v188 = vpop.permute.xlu0 %187
    %v190 = vmul.f32 %v172, %v188
    %vm191 = vcmp.lt.s32.totalorder %v96, %v33
    %v192 = vsel %vm191, 1, 0
    %193 = vset.pattern.permute.xlu0 0
    %194 = vperm.xlu0 %193, %v192
    %v195 = vpop.permute.xlu0 %194
    %vm196 = vcmp.eq.s32.totalorder %v195, 1
    %v197 = vsel %vm196, %v190, %v86
    %v198 = vsel %vm196, %v184, %v87
    %vm199 = vcmp.eq.s32.totalorder %v96, %v34
    %v200 = vsel %vm199, 1, 0
    %201 = vset.pattern.permute.xlu0 0
    %202 = vperm.xlu0 %201, %v200
    %v203 = vpop.permute.xlu0 %202
    %vm204 = vcmp.eq.s32.totalorder %v203, 1
    %v205 = vsel %vm204, %v197, %v94
    %v206 = vpack.c.bf16 %v197, %v197
    %v207 = vsel %vm41, 2, 5
    %209 = vrot.lane.b32.xlu0 %v206, 32
    %v210 = vpop.permute.xlu0 %209
    %v212 = vsel %vm120, %v210, 0
    %214 = vmatpush.bf16.msra.mxu0 0
    %215 = vmatpush.bf16.msra.mxu0 0
    %216 = vmatpush.bf16.msra.mxu0 0
    %217 = vmatpush.bf16.msra.mxu0 0
    %218 = vmatpush.bf16.msra.mxu0 0
    %219 = vmatpush.bf16.msra.mxu0 0
    %220 = vmatpush.bf16.msra.mxu0 %v114
    %221 = vmatpush.bf16.msra.mxu0 %v112
    %222 = vmatmul.bf16.gmra.mxu0 %v212
    %v223 = vpop.f32.mrf.mxu0
    %v224 = vadd.f32 0.0, %v223
    %v225 = vpop.f32.mrf.mxu0
    %226 = vdwg.mxu0
    %227 = vmatpush.bf16.msra.mxu0 0
    %228 = vmatpush.bf16.msra.mxu0 0
    %229 = vmatpush.bf16.msra.mxu0 0
    %230 = vmatpush.bf16.msra.mxu0 0
    %231 = vmatpush.bf16.msra.mxu0 0
    %232 = vmatpush.bf16.msra.mxu0 0
    %233 = vmatpush.bf16.msra.mxu0 %v115
    %234 = vmatpush.bf16.msra.mxu0 %v113
    %235 = vmatmul.bf16.gmra.mxu0 %v212
    %v236 = vpop.f32.mrf.mxu0
    %v237 = vadd.f32 0.0, %v236
    %v238 = vpop.f32.mrf.mxu0
    %239 = vdwg.mxu0
    %v240 = vsel %vm151, %v224, %v237
    %v241 = vadd.f32 %v27, %v240
    %v242 = vxor.u32 %v241, 2147483648
    %v243 = vmul.f32 %v242, 1.442695
    %v244 = vpow.pop %v243
    %v245 = vadd.f32 %v244, 1.0
    %v246 = vrcp.pop %v245
    %v247 = vmul.f32 %v245, %v246
    %v248 = vsub.f32 1.0, %v247
    %v249 = vmul.f32 %v246, %v248
    %v250 = vadd.f32 %v246, %v249
    %vm251 = vweird.f32 %v245
    %vm252 = vweird.f32 %v246
    %vm253 = vmor %vm251, %vm252
    %v254 = vsel %vm253, %v246, %v250
    %v255 = vand.u32 2147483647, %v245
    %vm256 = vcmp.eq.f32.partialorder %v255, 8.507059e+37
    %v257 = vand.u32 %v245, 2147483648
    %v258 = vor.u32 1.1754944e-38, %v257
    %v259 = vsel %vm256, %v258, %v254
    %v260 = vmul.f32 1.0, %v259
    %v261 = vtanh.pop %v241
    %v262 = vmul.f32 %v260, %v198
    %264 = vrot.lane.b32.xlu0 %v261, 64
    %v265 = vpop.permute.xlu0 %264
    %v267 = vmul.f32 %v260, %v265
    %269 = vrot.lane.b32.xlu0 %v267, 32
    %v270 = vpop.permute.xlu0 %269
    %v272 = vadd.f32 %v262, %v270
    %v273 = vtanh.pop %v272
    %275 = vrot.lane.b32.xlu0 %v273, 64
    %v276 = vpop.permute.xlu0 %275
    %v278 = vmul.f32 %v260, %v276
    %vm279 = vcmp.lt.s32.totalorder %v207, %v33
    %v280 = vsel %vm279, 1, 0
    %281 = vset.pattern.permute.xlu0 0
    %282 = vperm.xlu0 %281, %v280
    %v283 = vpop.permute.xlu0 %282
    %vm284 = vcmp.eq.s32.totalorder %v283, 1
    %v285 = vsel %vm284, %v278, %v197
    %v286 = vsel %vm284, %v272, %v198
    %vm287 = vcmp.eq.s32.totalorder %v207, %v34
    %v288 = vsel %vm287, 1, 0
    %289 = vset.pattern.permute.xlu0 0
    %290 = vperm.xlu0 %289, %v288
    %v291 = vpop.permute.xlu0 %290
    %vm292 = vcmp.eq.s32.totalorder %v291, 1
    %v293 = vsel %vm292, %v285, %v205
    %v294 = vpack.c.bf16 %v285, %v285
    %v295 = vsel %vm41, 3, 4
    %297 = vrot.lane.b32.xlu0 %v294, 32
    %v298 = vpop.permute.xlu0 %297
    %v300 = vsel %vm120, %v298, 0
    %302 = vmatpush.bf16.msra.mxu0 0
    %303 = vmatpush.bf16.msra.mxu0 0
    %304 = vmatpush.bf16.msra.mxu0 0
    %305 = vmatpush.bf16.msra.mxu0 0
    %306 = vmatpush.bf16.msra.mxu0 0
    %307 = vmatpush.bf16.msra.mxu0 0
    %308 = vmatpush.bf16.msra.mxu0 %v114
    %309 = vmatpush.bf16.msra.mxu0 %v112
    %310 = vmatmul.bf16.gmra.mxu0 %v300
    %v311 = vpop.f32.mrf.mxu0
    %v312 = vadd.f32 0.0, %v311
    %v313 = vpop.f32.mrf.mxu0
    %314 = vdwg.mxu0
    %315 = vmatpush.bf16.msra.mxu0 0
    %316 = vmatpush.bf16.msra.mxu0 0
    %317 = vmatpush.bf16.msra.mxu0 0
    %318 = vmatpush.bf16.msra.mxu0 0
    %319 = vmatpush.bf16.msra.mxu0 0
    %320 = vmatpush.bf16.msra.mxu0 0
    %321 = vmatpush.bf16.msra.mxu0 %v115
    %322 = vmatpush.bf16.msra.mxu0 %v113
    %323 = vmatmul.bf16.gmra.mxu0 %v300
    %v324 = vpop.f32.mrf.mxu0
    %v325 = vadd.f32 0.0, %v324
    %v326 = vpop.f32.mrf.mxu0
    %327 = vdwg.mxu0
    %v328 = vsel %vm151, %v312, %v325
    %v329 = vadd.f32 %v28, %v328
    %v330 = vxor.u32 %v329, 2147483648
    %v331 = vmul.f32 %v330, 1.442695
    %v332 = vpow.pop %v331
    %v333 = vadd.f32 %v332, 1.0
    %v334 = vrcp.pop %v333
    %v335 = vmul.f32 %v333, %v334
    %v336 = vsub.f32 1.0, %v335
    %v337 = vmul.f32 %v334, %v336
    %v338 = vadd.f32 %v334, %v337
    %vm339 = vweird.f32 %v333
    %vm340 = vweird.f32 %v334
    %vm341 = vmor %vm339, %vm340
    %v342 = vsel %vm341, %v334, %v338
    %v343 = vand.u32 2147483647, %v333
    %vm344 = vcmp.eq.f32.partialorder %v343, 8.507059e+37
    %v345 = vand.u32 %v333, 2147483648
    %v346 = vor.u32 1.1754944e-38, %v345
    %v347 = vsel %vm344, %v346, %v342
    %v348 = vmul.f32 1.0, %v347
    %v349 = vtanh.pop %v329
    %v350 = vmul.f32 %v348, %v286
    %352 = vrot.lane.b32.xlu0 %v349, 64
    %v353 = vpop.permute.xlu0 %352
    %v355 = vmul.f32 %v348, %v353
    %357 = vrot.lane.b32.xlu0 %v355, 32
    %v358 = vpop.permute.xlu0 %357
    %v360 = vadd.f32 %v350, %v358
    %v361 = vtanh.pop %v360
    %363 = vrot.lane.b32.xlu0 %v361, 64
    %v364 = vpop.permute.xlu0 %363
    %v366 = vmul.f32 %v348, %v364
    %vm367 = vcmp.lt.s32.totalorder %v295, %v33
    %v368 = vsel %vm367, 1, 0
    %369 = vset.pattern.permute.xlu0 0
    %370 = vperm.xlu0 %369, %v368
    %v371 = vpop.permute.xlu0 %370
    %vm372 = vcmp.eq.s32.totalorder %v371, 1
    %v373 = vsel %vm372, %v366, %v285
    %v374 = vsel %vm372, %v360, %v286
    %vm375 = vcmp.eq.s32.totalorder %v295, %v34
    %v376 = vsel %vm375, 1, 0
    %377 = vset.pattern.permute.xlu0 0
    %378 = vperm.xlu0 %377, %v376
    %v379 = vpop.permute.xlu0 %378
    %vm380 = vcmp.eq.s32.totalorder %v379, 1
    %v381 = vsel %vm380, %v373, %v293
    %v382 = vpack.c.bf16 %v373, %v373
    %v383 = vsel %vm41, 4, 3
    %385 = vrot.lane.b32.xlu0 %v382, 32
    %v386 = vpop.permute.xlu0 %385
    %v388 = vsel %vm120, %v386, 0
    %390 = vmatpush.bf16.msra.mxu0 0
    %391 = vmatpush.bf16.msra.mxu0 0
    %392 = vmatpush.bf16.msra.mxu0 0
    %393 = vmatpush.bf16.msra.mxu0 0
    %394 = vmatpush.bf16.msra.mxu0 0
    %395 = vmatpush.bf16.msra.mxu0 0
    %396 = vmatpush.bf16.msra.mxu0 %v114
    %397 = vmatpush.bf16.msra.mxu0 %v112
    %398 = vmatmul.bf16.gmra.mxu0 %v388
    %v399 = vpop.f32.mrf.mxu0
    %v400 = vadd.f32 0.0, %v399
    %v401 = vpop.f32.mrf.mxu0
    %402 = vdwg.mxu0
    %403 = vmatpush.bf16.msra.mxu0 0
    %404 = vmatpush.bf16.msra.mxu0 0
    %405 = vmatpush.bf16.msra.mxu0 0
    %406 = vmatpush.bf16.msra.mxu0 0
    %407 = vmatpush.bf16.msra.mxu0 0
    %408 = vmatpush.bf16.msra.mxu0 0
    %409 = vmatpush.bf16.msra.mxu0 %v115
    %410 = vmatpush.bf16.msra.mxu0 %v113
    %411 = vmatmul.bf16.gmra.mxu0 %v388
    %v412 = vpop.f32.mrf.mxu0
    %v413 = vadd.f32 0.0, %v412
    %v414 = vpop.f32.mrf.mxu0
    %415 = vdwg.mxu0
    %v416 = vsel %vm151, %v400, %v413
    %v417 = vadd.f32 %v29, %v416
    %v418 = vxor.u32 %v417, 2147483648
    %v419 = vmul.f32 %v418, 1.442695
    %v420 = vpow.pop %v419
    %v421 = vadd.f32 %v420, 1.0
    %v422 = vrcp.pop %v421
    %v423 = vmul.f32 %v421, %v422
    %v424 = vsub.f32 1.0, %v423
    %v425 = vmul.f32 %v422, %v424
    %v426 = vadd.f32 %v422, %v425
    %vm427 = vweird.f32 %v421
    %vm428 = vweird.f32 %v422
    %vm429 = vmor %vm427, %vm428
    %v430 = vsel %vm429, %v422, %v426
    %v431 = vand.u32 2147483647, %v421
    %vm432 = vcmp.eq.f32.partialorder %v431, 8.507059e+37
    %v433 = vand.u32 %v421, 2147483648
    %v434 = vor.u32 1.1754944e-38, %v433
    %v435 = vsel %vm432, %v434, %v430
    %v436 = vmul.f32 1.0, %v435
    %v437 = vtanh.pop %v417
    %v438 = vmul.f32 %v436, %v374
    %440 = vrot.lane.b32.xlu0 %v437, 64
    %v441 = vpop.permute.xlu0 %440
    %v443 = vmul.f32 %v436, %v441
    %445 = vrot.lane.b32.xlu0 %v443, 32
    %v446 = vpop.permute.xlu0 %445
    %v448 = vadd.f32 %v438, %v446
    %v449 = vtanh.pop %v448
    %451 = vrot.lane.b32.xlu0 %v449, 64
    %v452 = vpop.permute.xlu0 %451
    %v454 = vmul.f32 %v436, %v452
    %vm455 = vcmp.lt.s32.totalorder %v383, %v33
    %v456 = vsel %vm455, 1, 0
    %457 = vset.pattern.permute.xlu0 0
    %458 = vperm.xlu0 %457, %v456
    %v459 = vpop.permute.xlu0 %458
    %vm460 = vcmp.eq.s32.totalorder %v459, 1
    %v461 = vsel %vm460, %v454, %v373
    %v462 = vsel %vm460, %v448, %v374
    %vm463 = vcmp.eq.s32.totalorder %v383, %v34
    %v464 = vsel %vm463, 1, 0
    %465 = vset.pattern.permute.xlu0 0
    %466 = vperm.xlu0 %465, %v464
    %v467 = vpop.permute.xlu0 %466
    %vm468 = vcmp.eq.s32.totalorder %v467, 1
    %v469 = vsel %vm468, %v461, %v381
    %v470 = vpack.c.bf16 %v461, %v461
    %v471 = vsel %vm41, 5, 2
    %473 = vrot.lane.b32.xlu0 %v470, 32
    %v474 = vpop.permute.xlu0 %473
    %v476 = vsel %vm120, %v474, 0
    %478 = vmatpush.bf16.msra.mxu0 0
    %479 = vmatpush.bf16.msra.mxu0 0
    %480 = vmatpush.bf16.msra.mxu0 0
    %481 = vmatpush.bf16.msra.mxu0 0
    %482 = vmatpush.bf16.msra.mxu0 0
    %483 = vmatpush.bf16.msra.mxu0 0
    %484 = vmatpush.bf16.msra.mxu0 %v114
    %485 = vmatpush.bf16.msra.mxu0 %v112
    %486 = vmatmul.bf16.gmra.mxu0 %v476
    %v487 = vpop.f32.mrf.mxu0
    %v488 = vadd.f32 0.0, %v487
    %v489 = vpop.f32.mrf.mxu0
    %490 = vdwg.mxu0
    %491 = vmatpush.bf16.msra.mxu0 0
    %492 = vmatpush.bf16.msra.mxu0 0
    %493 = vmatpush.bf16.msra.mxu0 0
    %494 = vmatpush.bf16.msra.mxu0 0
    %495 = vmatpush.bf16.msra.mxu0 0
    %496 = vmatpush.bf16.msra.mxu0 0
    %497 = vmatpush.bf16.msra.mxu0 %v115
    %498 = vmatpush.bf16.msra.mxu0 %v113
    %499 = vmatmul.bf16.gmra.mxu0 %v476
    %v500 = vpop.f32.mrf.mxu0
    %v501 = vadd.f32 0.0, %v500
    %v502 = vpop.f32.mrf.mxu0
    %503 = vdwg.mxu0
    %v504 = vsel %vm151, %v488, %v501
    %v505 = vadd.f32 %v30, %v504
    %v506 = vxor.u32 %v505, 2147483648
    %v507 = vmul.f32 %v506, 1.442695
    %v508 = vpow.pop %v507
    %v509 = vadd.f32 %v508, 1.0
    %v510 = vrcp.pop %v509
    %v511 = vmul.f32 %v509, %v510
    %v512 = vsub.f32 1.0, %v511
    %v513 = vmul.f32 %v510, %v512
    %v514 = vadd.f32 %v510, %v513
    %vm515 = vweird.f32 %v509
    %vm516 = vweird.f32 %v510
    %vm517 = vmor %vm515, %vm516
    %v518 = vsel %vm517, %v510, %v514
    %v519 = vand.u32 2147483647, %v509
    %vm520 = vcmp.eq.f32.partialorder %v519, 8.507059e+37
    %v521 = vand.u32 %v509, 2147483648
    %v522 = vor.u32 1.1754944e-38, %v521
    %v523 = vsel %vm520, %v522, %v518
    %v524 = vmul.f32 1.0, %v523
    %v525 = vtanh.pop %v505
    %v526 = vmul.f32 %v524, %v462
    %528 = vrot.lane.b32.xlu0 %v525, 64
    %v529 = vpop.permute.xlu0 %528
    %v531 = vmul.f32 %v524, %v529
    %533 = vrot.lane.b32.xlu0 %v531, 32
    %v534 = vpop.permute.xlu0 %533
    %v536 = vadd.f32 %v526, %v534
    %v537 = vtanh.pop %v536
    %539 = vrot.lane.b32.xlu0 %v537, 64
    %v540 = vpop.permute.xlu0 %539
    %v542 = vmul.f32 %v524, %v540
    %vm543 = vcmp.lt.s32.totalorder %v471, %v33
    %v544 = vsel %vm543, 1, 0
    %545 = vset.pattern.permute.xlu0 0
    %546 = vperm.xlu0 %545, %v544
    %v547 = vpop.permute.xlu0 %546
    %vm548 = vcmp.eq.s32.totalorder %v547, 1
    %v549 = vsel %vm548, %v542, %v461
    %v550 = vsel %vm548, %v536, %v462
    %vm551 = vcmp.eq.s32.totalorder %v471, %v34
    %v552 = vsel %vm551, 1, 0
    %553 = vset.pattern.permute.xlu0 0
    %554 = vperm.xlu0 %553, %v552
    %v555 = vpop.permute.xlu0 %554
    %vm556 = vcmp.eq.s32.totalorder %v555, 1
    %v557 = vsel %vm556, %v549, %v469
    %v558 = vpack.c.bf16 %v549, %v549
    %v559 = vsel %vm41, 6, 1
    %561 = vrot.lane.b32.xlu0 %v558, 32
    %v562 = vpop.permute.xlu0 %561
    %v564 = vsel %vm120, %v562, 0
    %566 = vmatpush.bf16.msra.mxu0 0
    %567 = vmatpush.bf16.msra.mxu0 0
    %568 = vmatpush.bf16.msra.mxu0 0
    %569 = vmatpush.bf16.msra.mxu0 0
    %570 = vmatpush.bf16.msra.mxu0 0
    %571 = vmatpush.bf16.msra.mxu0 0
    %572 = vmatpush.bf16.msra.mxu0 %v114
    %573 = vmatpush.bf16.msra.mxu0 %v112
    %574 = vmatmul.bf16.gmra.mxu0 %v564
    %v575 = vpop.f32.mrf.mxu0
    %v576 = vadd.f32 0.0, %v575
    %v577 = vpop.f32.mrf.mxu0
    %578 = vdwg.mxu0
    %579 = vmatpush.bf16.msra.mxu0 0
    %580 = vmatpush.bf16.msra.mxu0 0
    %581 = vmatpush.bf16.msra.mxu0 0
    %582 = vmatpush.bf16.msra.mxu0 0
    %583 = vmatpush.bf16.msra.mxu0 0
    %584 = vmatpush.bf16.msra.mxu0 0
    %585 = vmatpush.bf16.msra.mxu0 %v115
    %586 = vmatpush.bf16.msra.mxu0 %v113
    %587 = vmatmul.bf16.gmra.mxu0 %v564
    %v588 = vpop.f32.mrf.mxu0
    %v589 = vadd.f32 0.0, %v588
    %v590 = vpop.f32.mrf.mxu0
    %591 = vdwg.mxu0
    %v592 = vsel %vm151, %v576, %v589
    %v593 = vadd.f32 %v31, %v592
    %v594 = vxor.u32 %v593, 2147483648
    %v595 = vmul.f32 %v594, 1.442695
    %v596 = vpow.pop %v595
    %v597 = vadd.f32 %v596, 1.0
    %v598 = vrcp.pop %v597
    %v599 = vmul.f32 %v597, %v598
    %v600 = vsub.f32 1.0, %v599
    %v601 = vmul.f32 %v598, %v600
    %v602 = vadd.f32 %v598, %v601
    %vm603 = vweird.f32 %v597
    %vm604 = vweird.f32 %v598
    %vm605 = vmor %vm603, %vm604
    %v606 = vsel %vm605, %v598, %v602
    %v607 = vand.u32 2147483647, %v597
    %vm608 = vcmp.eq.f32.partialorder %v607, 8.507059e+37
    %v609 = vand.u32 %v597, 2147483648
    %v610 = vor.u32 1.1754944e-38, %v609
    %v611 = vsel %vm608, %v610, %v606
    %v612 = vmul.f32 1.0, %v611
    %v613 = vtanh.pop %v593
    %v614 = vmul.f32 %v612, %v550
    %616 = vrot.lane.b32.xlu0 %v613, 64
    %v617 = vpop.permute.xlu0 %616
    %v619 = vmul.f32 %v612, %v617
    %621 = vrot.lane.b32.xlu0 %v619, 32
    %v622 = vpop.permute.xlu0 %621
    %v624 = vadd.f32 %v614, %v622
    %v625 = vtanh.pop %v624
    %627 = vrot.lane.b32.xlu0 %v625, 64
    %v628 = vpop.permute.xlu0 %627
    %v630 = vmul.f32 %v612, %v628
    %vm631 = vcmp.lt.s32.totalorder %v559, %v33
    %v632 = vsel %vm631, 1, 0
    %633 = vset.pattern.permute.xlu0 0
    %634 = vperm.xlu0 %633, %v632
    %v635 = vpop.permute.xlu0 %634
    %vm636 = vcmp.eq.s32.totalorder %v635, 1
    %v637 = vsel %vm636, %v630, %v549
    %v638 = vsel %vm636, %v624, %v550
    %vm639 = vcmp.eq.s32.totalorder %v559, %v34
    %v640 = vsel %vm639, 1, 0
    %641 = vset.pattern.permute.xlu0 0
    %642 = vperm.xlu0 %641, %v640
    %v643 = vpop.permute.xlu0 %642
    %vm644 = vcmp.eq.s32.totalorder %v643, 1
    %v645 = vsel %vm644, %v637, %v557
    %v646 = vpack.c.bf16 %v637, %v637
    %v647 = vsel %vm41, 7, 0
    %649 = vrot.lane.b32.xlu0 %v646, 32
    %v650 = vpop.permute.xlu0 %649
    %v652 = vsel %vm120, %v650, 0
    %654 = vmatpush.bf16.msra.mxu0 0
    %655 = vmatpush.bf16.msra.mxu0 0
    %656 = vmatpush.bf16.msra.mxu0 0
    %657 = vmatpush.bf16.msra.mxu0 0
    %658 = vmatpush.bf16.msra.mxu0 0
    %659 = vmatpush.bf16.msra.mxu0 0
    %660 = vmatpush.bf16.msra.mxu0 %v114
    %661 = vmatpush.bf16.msra.mxu0 %v112
    %662 = vmatmul.bf16.gmra.mxu0 %v652
    %v663 = vpop.f32.mrf.mxu0
    %v664 = vadd.f32 0.0, %v663
    %v665 = vpop.f32.mrf.mxu0
    %666 = vdwg.mxu0
    %667 = vmatpush.bf16.msra.mxu0 0
    %668 = vmatpush.bf16.msra.mxu0 0
    %669 = vmatpush.bf16.msra.mxu0 0
    %670 = vmatpush.bf16.msra.mxu0 0
    %671 = vmatpush.bf16.msra.mxu0 0
    %672 = vmatpush.bf16.msra.mxu0 0
    %673 = vmatpush.bf16.msra.mxu0 %v115
    %674 = vmatpush.bf16.msra.mxu0 %v113
    %675 = vmatmul.bf16.gmra.mxu0 %v652
    %v676 = vpop.f32.mrf.mxu0
    %v677 = vadd.f32 0.0, %v676
    %v678 = vpop.f32.mrf.mxu0
    %679 = vdwg.mxu0
    %v680 = vsel %vm151, %v664, %v677
    %v681 = vadd.f32 %v32, %v680
    %v682 = vxor.u32 %v681, 2147483648
    %v683 = vmul.f32 %v682, 1.442695
    %v684 = vpow.pop %v683
    %v685 = vadd.f32 %v684, 1.0
    %v686 = vrcp.pop %v685
    %v687 = vmul.f32 %v685, %v686
    %v688 = vsub.f32 1.0, %v687
    %v689 = vmul.f32 %v686, %v688
    %v690 = vadd.f32 %v686, %v689
    %vm691 = vweird.f32 %v685
    %vm692 = vweird.f32 %v686
    %vm693 = vmor %vm691, %vm692
    %v694 = vsel %vm693, %v686, %v690
    %v695 = vand.u32 2147483647, %v685
    %vm696 = vcmp.eq.f32.partialorder %v695, 8.507059e+37
    %v697 = vand.u32 %v685, 2147483648
    %v698 = vor.u32 1.1754944e-38, %v697
    %v699 = vsel %vm696, %v698, %v694
    %v700 = vmul.f32 1.0, %v699
    %v701 = vtanh.pop %v681
    %v702 = vmul.f32 %v700, %v638
    %704 = vrot.lane.b32.xlu0 %v701, 64
    %v705 = vpop.permute.xlu0 %704
    %v707 = vmul.f32 %v700, %v705
    %709 = vrot.lane.b32.xlu0 %v707, 32
    %v710 = vpop.permute.xlu0 %709
    %v712 = vadd.f32 %v702, %v710
    %v713 = vtanh.pop %v712
    %715 = vrot.lane.b32.xlu0 %v713, 64
    %v716 = vpop.permute.xlu0 %715
    %v718 = vmul.f32 %v700, %v716
    %vm719 = vcmp.lt.s32.totalorder %v647, %v33
    %v720 = vsel %vm719, 1, 0
    %721 = vset.pattern.permute.xlu0 0
    %722 = vperm.xlu0 %721, %v720
    %v723 = vpop.permute.xlu0 %722
    %vm724 = vcmp.eq.s32.totalorder %v723, 1
    %v725 = vsel %vm724, %v718, %v637
    %vm726 = vcmp.eq.s32.totalorder %v647, %v34
    %v727 = vsel %vm726, 1, 0
    %728 = vset.pattern.permute.xlu0 0
    %729 = vperm.xlu0 %728, %v727
    %v730 = vpop.permute.xlu0 %729
    %vm731 = vcmp.eq.s32.totalorder %v730, 1
    %v732 = vsel %vm731, %v725, %v645
    %v733 = vld [vmem:[%s4] sm:$0xff]
    %v734 = vld [vmem:[%s4 + $0x8] sm:$0xff]
    %v735 = vld [vmem:[%s4 + $0x10] sm:$0xff]
    %v736 = vld [vmem:[%s4 + $0x18] sm:$0xff]
    %738 = vrot.lane.b32.xlu0 %v732, 32
    %v739 = vpop.permute.xlu0 %738
    %v740 = vsel %vm120, %v739, 0
    %742 = vmatpush.msra.mxu0 0.0
    %743 = vmatpush.msra.mxu0 0.0
    %744 = vmatpush.msra.mxu0 0.0
    %745 = vmatpush.msra.mxu0 0.0
    %746 = vmatpush.msra.mxu0 0.0
    %747 = vmatpush.msra.mxu0 0.0
    %748 = vmatpush.msra.mxu0 0.0
    %749 = vmatpush.msra.mxu0 0.0
    %750 = vmatpush.msra.mxu0 0.0
    %751 = vmatpush.msra.mxu0 0.0
    %752 = vmatpush.msra.mxu0 0.0
    %753 = vmatpush.msra.mxu0 0.0
    %754 = vmatpush.msra.mxu0 %v736
    %755 = vmatpush.msra.mxu0 %v735
    %756 = vmatpush.msra.mxu0 %v734
    %757 = vmatpush.msra.mxu0 %v733
    %758 = vmatmul.f32.gmra.mxu0 %v740
    %v759 = vpop.f32.mrf.mxu0
    %v760 = vadd.f32 0.0, %v759
    %761 = vdwg.mxu0
    %v763 = vrot.slane %v760, 4
    %764 = vrot.lane.b32.xlu0 %v763, 120
    %v765 = vpop.permute.xlu0 %764
    %v767 = vadd.f32 %v760, %v765
    %v768 = vld [vmem:[%s5] sm:$0x1]
    %v770 = vperm.slane %v768, 0
    %v772 = vadd.f32 %v767, %v770
    %vm773 = vcmask 60416
    %774 = vst.msk [vmem:[#allocation2] sm:$0xf] %vm773, %v772
    // Predicated region
    $region26: #{_forward.1} parent=1 // pred_check
      _
    $region27: #{_forward.1} parent=1 // pred_check_branch
      %776 = sbr.rel (0) target = $region29
    $region28: #{_forward.1} parent=1 // pred_region
      %778 = vsyncadd [#allocation3], 0
      %s780 = sshll.u32 [#allocation2], 4
      %s781 = int_to_ptr.vmem [resolvable:$true] %s780
      %s782 = sshll.u32 %s6, 4
      %s783 = int_to_ptr.hbm [resolvable:$true] %s782
      %785 = dma.vmem_to_hbm [thread:$0]  %s781, 64, %s783, [#allocation3]
    $region29: #{_forward.1} parent=1 // pred_fallthru
      _
    // Predicated region
    $region30: #{_forward.1} parent=1 // pred_check
      _
    $region31: #{_forward.1} parent=1 // pred_check_branch
      %787 = sbr.rel (0) target = $region33
    $region32: #{_forward.1} parent=1 // pred_region
      %789 = dma.done [#allocation3], 64
    $region33: #{_forward.1} parent=1 // pred_fallthru
      _
    %790 = vsyncpa [#allocation3], 1

</llo_original>
